<compile_context>
chip_gen: v7x
topology: tpu7x:2x2x1
jax: 0.10.0
libtpu: 0.0.40
codegen_flags: <defaults>
</compile_context>

<pallas_src>
import functools

import numpy as np
import jax
import jax.numpy as jnp
from jax.experimental import pallas as pl
from jax.experimental.pallas import tpu as pltpu


def _tensor_split_sizes(dim, sections):
    """Chunk sizes produced by torch.tensor_split(sections) along a dim of length `dim`."""
    base, rem = divmod(dim, sections)
    return [base + 1 if i < rem else base for i in range(sections)]


def _chunk_mean_matrix(dim, sections):
    """W such that z @ W == stack([chunk.mean(-1) for chunk in tensor_split(z, sections, -1)], -1)."""
    w = np.zeros((dim, sections), np.float32)
    off = 0
    for c, sz in enumerate(_tensor_split_sizes(dim, sections)):
        if sz > 0:
            w[off:off + sz, c] = 1.0 / sz
        off += sz
    return jnp.asarray(w)


def _node_part_kernel(z_ref, w_ref, x_ref, xc_ref, mask_ref, wgt_ref, *, threshold):
    """One grid step == one community c == program_id(0).
    z_ref: [n, D]  w_ref: [D, C]  x_ref: [n, F]
    xc_ref: [1, n, F]   mask_ref/wgt_ref: [1, n, 1]   (blocks of the [C, ...] outputs)."""
    c = pl.program_id(0)

    # phi[:, j] = mean of the j-th tensor_split chunk of z  (single small MXU matmul)
    phi = jnp.dot(z_ref[...], w_ref[...], preferred_element_type=jnp.float32)   # [n, C]

    # softmax over the NODE axis (dim 0), per community column
    phi = phi - jnp.max(phi, axis=0, keepdims=True)
    e = jnp.exp(phi)
    phi = e / jnp.sum(e, axis=0, keepdims=True)

    # node_weight[i, j] = phi[i, j] * sum_{l != i} s[l]   (closed form of chunk_computer)
    s = jnp.sum(phi, axis=1, keepdims=True)                   # [n, 1]
    total = jnp.sum(s, axis=0, keepdims=True)                 # [1, 1]
    nw = phi * (total - s)                                    # [n, C]

    row_max = jnp.max(nw, axis=1, keepdims=True)              # [n, 1]
    mask = jnp.logical_or(nw == row_max, nw >= threshold)     # [n, C] bool

    # lane-select this program's community column (avoids dynamic lane slicing)
    col_sel = jax.lax.broadcasted_iota(jnp.int32, nw.shape, 1) == c
    col_m = jnp.sum(jnp.where(jnp.logical_and(mask, col_sel), 1.0, 0.0),
                    axis=1, keepdims=True)                     # [n, 1] in {0, 1}
    col_w = jnp.sum(jnp.where(col_sel, nw, 0.0), axis=1, keepdims=True)

    xc_ref[0] = x_ref[...] * col_m            # zero out rows not in community c (lane-dense F)
    mask_ref[0] = col_m.astype(jnp.int32)
    wgt_ref[0] = col_w


def node_part_forward(x, z, n_coms, threshold=1.0):
    """x: [n, F] node features, z: [n, D] node-community affiliations.
    Returns (x_commun [C, n, F], node_mask [n, C] bool, node_weight [n, C] f32)."""
    n, d = z.shape
    f = x.shape[-1]
    w = _chunk_mean_matrix(d, n_coms)

    kernel = functools.partial(_node_part_kernel, threshold=float(threshold))
    x_commun, mask_col, wgt_col = pl.pallas_call(
        kernel,
        out_shape=(
            jax.ShapeDtypeStruct((n_coms, n, f), jnp.float32),
            jax.ShapeDtypeStruct((n_coms, n, 1), jnp.int32),
            jax.ShapeDtypeStruct((n_coms, n, 1), jnp.float32),
        ),
        grid=(n_coms,),
        in_specs=[
            pl.BlockSpec((n, d), lambda c: (0, 0)),          # z (constant block -> loaded once)
            pl.BlockSpec((d, n_coms), lambda c: (0, 0)),     # chunk-mean matrix W
            pl.BlockSpec((n, f), lambda c: (0, 0)),          # x
        ],
        out_specs=(
            pl.BlockSpec((1, n, f), lambda c: (c, 0, 0)),    # x_commun[c]
            pl.BlockSpec((1, n, 1), lambda c: (c, 0, 0)),    # node_mask column c
            pl.BlockSpec((1, n, 1), lambda c: (c, 0, 0)),    # node_weight column c
        ),
        compiler_params=pltpu.CompilerParams(
            dimension_semantics=("parallel",)),              # community axis shards across TCs on v7x
    )(z.astype(jnp.float32), w, x.astype(jnp.float32))

    node_mask = (mask_col[:, :, 0] > 0).T        # [n, C] bool
    node_weight = wgt_col[:, :, 0].T             # [n, C] f32
    return x_commun, node_mask, node_weight


def _node_part_reference(x, z, n_coms, threshold):
    """Pure-JAX reference of the same closed form (for correctness checking)."""
    w = _chunk_mean_matrix(z.shape[-1], n_coms)
    phi = jax.nn.softmax(z.astype(jnp.float32) @ w, axis=0)
    s = phi.sum(axis=1, keepdims=True)
    nw = phi * (phi.sum() - s)
    mask = (nw == nw.max(axis=1, keepdims=True)) | (nw >= threshold)
    x_parts = jnp.where(mask.T[:, :, None], x.astype(jnp.float32)[None], 0.0)
    return x_parts, mask, nw


if __name__ == "__main__":
    N_NODES, Z_DIM, F_DIM, N_COMS = 16, 32, 128, 4

    key = jax.random.PRNGKey(0)
    kx, kz = jax.random.split(key)
    x = jax.random.normal(kx, (N_NODES, F_DIM), jnp.float32)
    z = jax.random.normal(kz, (N_NODES, Z_DIM), jnp.float32)

    x_commun, node_mask, node_weight = node_part_forward(x, z, N_COMS, threshold=1.0)
    jax.block_until_ready(x_commun)
    jax.block_until_ready(node_mask)
    jax.block_until_ready(node_weight)

    # torch-API-style outputs (host-side glue)
    x_commun_list = [x_commun[c] for c in range(N_COMS)]
    indices_list = [np.nonzero(np.asarray(node_mask[:, c]))[0] for c in range(N_COMS)]

    # checks
    _, _, nw_ref = _node_part_reference(x, z, N_COMS, 1.0)
    assert x_commun.shape == (N_COMS, N_NODES, F_DIM)
    assert node_mask.shape == (N_NODES, N_COMS)
    assert len(x_commun_list) == N_COMS and len(indices_list) == N_COMS
    np.testing.assert_allclose(np.asarray(node_weight), np.asarray(nw_ref),
                               rtol=1e-4, atol=1e-5)
    # every node belongs to at least one community (row-max tie is always True)
    assert bool(jnp.all(jnp.any(node_mask, axis=1)))
    # kernel outputs are internally consistent: x_commun rows follow the kernel's own mask
    expect = jnp.where(node_mask.T[:, :, None], x[None], 0.0)
    np.testing.assert_allclose(np.asarray(x_commun), np.asarray(expect), rtol=0, atol=0)

    print("KERNEL_OK")
</pallas_src>

<mosaic_0001>
module attributes {stable_mosaic.version = 11 : i64} {
  func.func @_node_part_kernel(%arg0: i32, %arg1: memref<16x32xf32, #tpu.memory_space<vmem>>, %arg2: memref<32x4xf32, #tpu.memory_space<vmem>>, %arg3: memref<16x128xf32, #tpu.memory_space<vmem>>, %arg4: memref<1x16x128xf32, #tpu.memory_space<vmem>>, %arg5: memref<1x16x1xi32, #tpu.memory_space<vmem>>, %arg6: memref<1x16x1xf32, #tpu.memory_space<vmem>>) attributes {dimension_semantics = [#tpu.dimension_semantics<parallel>], iteration_bounds = array<i64: 4>, scalar_prefetch = 0 : i64, scratch_operands = 0 : i64, tpu.core_type = #tpu.core_type<tc>, window_params = [{pipeline_mode = #tpu.pipeline_mode<synchronous>, transform_indices = @transform_0, window_bounds = array<i64: 16, 32>}, {pipeline_mode = #tpu.pipeline_mode<synchronous>, transform_indices = @transform_1, window_bounds = array<i64: 32, 4>}, {pipeline_mode = #tpu.pipeline_mode<synchronous>, transform_indices = @transform_2, window_bounds = array<i64: 16, 128>}, {transform_indices = @transform_3, window_bounds = array<i64: 1, 16, 128>}, {transform_indices = @transform_4, window_bounds = array<i64: 1, 16, 1>}, {transform_indices = @transform_5, window_bounds = array<i64: 1, 16, 1>}]} {
    %c0 = arith.constant 0 : index
    %c0_0 = arith.constant 0 : index
    %0 = vector.load %arg1[%c0, %c0_0] : memref<16x32xf32, #tpu.memory_space<vmem>>, vector<16x32xf32>
    %c0_1 = arith.constant 0 : index
    %c0_2 = arith.constant 0 : index
    %1 = vector.load %arg2[%c0_1, %c0_2] : memref<32x4xf32, #tpu.memory_space<vmem>>, vector<32x4xf32>
    %cst = arith.constant dense<0.000000e+00> : vector<16x4xf32>
    %2 = tpu.matmul %0, %1, %cst {dimension_numbers = #tpu.dot_dimension_numbers<[1], [0], [0], [1], [0, 0, 1, 1], [], []>} : vector<16x32xf32>, vector<32x4xf32>, vector<16x4xf32> -> vector<16x4xf32>
    %cst_3 = arith.constant dense<0xFF800000> : vector<4xf32>
    %3 = vector.multi_reduction <maximumf>, %2, %cst_3 [0] : vector<16x4xf32> to vector<4xf32>
    %4 = vector.shape_cast %3 : vector<4xf32> to vector<1x4xf32>
    %5 = vector.broadcast %4 : vector<1x4xf32> to vector<16x4xf32>
    %6 = arith.subf %2, %5 : vector<16x4xf32>
    %7 = math.exp %6 : vector<16x4xf32>
    %cst_4 = arith.constant dense<0.000000e+00> : vector<4xf32>
    %8 = vector.multi_reduction <add>, %7, %cst_4 [0] : vector<16x4xf32> to vector<4xf32>
    %9 = vector.shape_cast %8 : vector<4xf32> to vector<1x4xf32>
    %10 = vector.broadcast %9 : vector<1x4xf32> to vector<16x4xf32>
    %11 = arith.divf %7, %10 : vector<16x4xf32>
    %cst_5 = arith.constant dense<0.000000e+00> : vector<16xf32>
    %12 = vector.multi_reduction <add>, %11, %cst_5 [1] : vector<16x4xf32> to vector<16xf32>
    %13 = vector.shape_cast %12 : vector<16xf32> to vector<16x1xf32>
    %cst_6 = arith.constant dense<0.000000e+00> : vector<1xf32>
    %14 = vector.multi_reduction <add>, %13, %cst_6 [0] : vector<16x1xf32> to vector<1xf32>
    %15 = vector.shape_cast %14 : vector<1xf32> to vector<1x1xf32>
    %16 = vector.broadcast %15 : vector<1x1xf32> to vector<16x1xf32>
    %17 = arith.subf %16, %13 : vector<16x1xf32>
    %18 = vector.broadcast %17 : vector<16x1xf32> to vector<16x4xf32>
    %19 = arith.mulf %11, %18 : vector<16x4xf32>
    %cst_7 = arith.constant dense<0xFF800000> : vector<16xf32>
    %20 = vector.multi_reduction <maximumf>, %19, %cst_7 [1] : vector<16x4xf32> to vector<16xf32>
    %21 = vector.shape_cast %20 : vector<16xf32> to vector<16x1xf32>
    %22 = vector.broadcast %21 : vector<16x1xf32> to vector<16x4xf32>
    %23 = arith.cmpf oeq, %19, %22 : vector<16x4xf32>
    %cst_8 = arith.constant 1.000000e+00 : f32
    %24 = vector.broadcast %cst_8 : f32 to vector<16x4xf32>
    %25 = arith.cmpf oge, %19, %24 : vector<16x4xf32>
    %26 = arith.ori %23, %25 : vector<16x4xi1>
    %27 = tpu.iota {dimensions = array<i32: 1>} : vector<16x4xi32>
    %28 = vector.broadcast %arg0 : i32 to vector<16x4xi32>
    %29 = arith.cmpi eq, %27, %28 : vector<16x4xi32>
    %30 = arith.andi %26, %29 : vector<16x4xi1>
    %cst_9 = arith.constant 1.000000e+00 : f32
    %cst_10 = arith.constant 0.000000e+00 : f32
    %31 = vector.broadcast %cst_9 : f32 to vector<16x4xf32>
    %32 = vector.broadcast %cst_10 : f32 to vector<16x4xf32>
    %33 = arith.select %30, %31, %32 : vector<16x4xi1>, vector<16x4xf32>
    %cst_11 = arith.constant dense<0.000000e+00> : vector<16xf32>
    %34 = vector.multi_reduction <add>, %33, %cst_11 [1] : vector<16x4xf32> to vector<16xf32>
    %35 = vector.shape_cast %34 : vector<16xf32> to vector<16x1xf32>
    %cst_12 = arith.constant 0.000000e+00 : f32
    %36 = vector.broadcast %cst_12 : f32 to vector<16x4xf32>
    %37 = arith.select %29, %19, %36 : vector<16x4xi1>, vector<16x4xf32>
    %cst_13 = arith.constant dense<0.000000e+00> : vector<16xf32>
    %38 = vector.multi_reduction <add>, %37, %cst_13 [1] : vector<16x4xf32> to vector<16xf32>
    %39 = vector.shape_cast %38 : vector<16xf32> to vector<16x1xf32>
    %c0_14 = arith.constant 0 : index
    %c0_15 = arith.constant 0 : index
    %40 = vector.load %arg3[%c0_14, %c0_15] : memref<16x128xf32, #tpu.memory_space<vmem>>, vector<16x128xf32>
    %41 = vector.broadcast %35 : vector<16x1xf32> to vector<16x128xf32>
    %42 = arith.mulf %40, %41 : vector<16x128xf32>
    %c0_16 = arith.constant 0 : index
    %c0_17 = arith.constant 0 : index
    %c0_18 = arith.constant 0 : index
    %43 = vector.load %arg4[%c0_16, %c0_17, %c0_18] : memref<1x16x128xf32, #tpu.memory_space<vmem>>, vector<1x16x128xf32>
    %44 = vector.shape_cast %43 : vector<1x16x128xf32> to vector<16x128xf32>
    %45 = vector.shape_cast %42 : vector<16x128xf32> to vector<1x16x128xf32>
    tpu.vector_store %arg4[%c0_16, %c0_17, %c0_18], %45 {strides = array<i32>} : memref<1x16x128xf32, #tpu.memory_space<vmem>>, vector<1x16x128xf32>,
    %46 = arith.fptosi %35 : vector<16x1xf32> to vector<16x1xi32>
    %c0_19 = arith.constant 0 : index
    %c0_20 = arith.constant 0 : index
    %c0_21 = arith.constant 0 : index
    %47 = vector.load %arg5[%c0_19, %c0_20, %c0_21] : memref<1x16x1xi32, #tpu.memory_space<vmem>>, vector<1x16x1xi32>
    %48 = vector.shape_cast %47 : vector<1x16x1xi32> to vector<16x1xi32>
    %49 = vector.shape_cast %46 : vector<16x1xi32> to vector<1x16x1xi32>
    tpu.vector_store %arg5[%c0_19, %c0_20, %c0_21], %49 {strides = array<i32>} : memref<1x16x1xi32, #tpu.memory_space<vmem>>, vector<1x16x1xi32>,
    %c0_22 = arith.constant 0 : index
    %c0_23 = arith.constant 0 : index
    %c0_24 = arith.constant 0 : index
    %50 = vector.load %arg6[%c0_22, %c0_23, %c0_24] : memref<1x16x1xf32, #tpu.memory_space<vmem>>, vector<1x16x1xf32>
    %51 = vector.shape_cast %50 : vector<1x16x1xf32> to vector<16x1xf32>
    %52 = vector.shape_cast %39 : vector<16x1xf32> to vector<1x16x1xf32>
    tpu.vector_store %arg6[%c0_22, %c0_23, %c0_24], %52 {strides = array<i32>} : memref<1x16x1xf32, #tpu.memory_space<vmem>>, vector<1x16x1xf32>,
    return
  }
  func.func @transform_0(%arg0: i32) -> (i32, i32) {
    %c0_i32 = arith.constant 0 : i32
    %c0_i32_0 = arith.constant 0 : i32
    %c0_i32_1 = arith.constant 0 : i32
    return %c0_i32, %c0_i32_0 : i32, i32
  }
  func.func @transform_1(%arg0: i32) -> (i32, i32) {
    %c0_i32 = arith.constant 0 : i32
    %c0_i32_0 = arith.constant 0 : i32
    %c0_i32_1 = arith.constant 0 : i32
    return %c0_i32, %c0_i32_0 : i32, i32
  }
  func.func @transform_2(%arg0: i32) -> (i32, i32) {
    %c0_i32 = arith.constant 0 : i32
    %c0_i32_0 = arith.constant 0 : i32
    %c0_i32_1 = arith.constant 0 : i32
    return %c0_i32, %c0_i32_0 : i32, i32
  }
  func.func @transform_3(%arg0: i32) -> (i32, i32, i32) {
    %c0_i32 = arith.constant 0 : i32
    %c0_i32_0 = arith.constant 0 : i32
    %c0_i32_1 = arith.constant 0 : i32
    return %arg0, %c0_i32, %c0_i32_0 : i32, i32, i32
  }
  func.func @transform_4(%arg0: i32) -> (i32, i32, i32) {
    %c0_i32 = arith.constant 0 : i32
    %c0_i32_0 = arith.constant 0 : i32
    %c0_i32_1 = arith.constant 0 : i32
    return %arg0, %c0_i32, %c0_i32_0 : i32, i32, i32
  }
  func.func @transform_5(%arg0: i32) -> (i32, i32, i32) {
    %c0_i32 = arith.constant 0 : i32
    %c0_i32_0 = arith.constant 0 : i32
    %c0_i32_1 = arith.constant 0 : i32
    return %arg0, %c0_i32, %c0_i32_0 : i32, i32, i32
  }
}

</mosaic_0001>

<llo_original>
// kernel: tpu_custom_call.1
$region0: #{tpu_custom_call.1}
  #allocation0 [shape = 'u32[]', space=smem, size = 0x4, offset = 0x4, fixed_abs, tag = 'smem constant byte address 0x4 - core index']
  #allocation1 [shape = 'u32[144,128]{1,0:T(1,128)}', space=vmem, size = 0x12000, scoped, tag = 'internal scratch']
  %s0 = inlined_call_operand.vmem [shape: f32[16,32], index: 0, kind: input, shape index: {}]
  %s1 = inlined_call_operand.vmem [shape: f32[32,4], index: 1, kind: input, shape index: {}]
  %s2 = inlined_call_operand.vmem [shape: f32[16,128], index: 2, kind: input, shape index: {}]
  %s3 = inlined_call_operand.hbm [shape: f32[4,16,128], index: 3, kind: output, shape index: {0}]
  %s4 = inlined_call_operand.vmem [shape: s32[4,16,1], index: 4, kind: output, shape index: {1}]
  %s5 = inlined_call_operand.vmem [shape: f32[4,16,1], index: 5, kind: output, shape index: {2}]
  %6 = xla_tuple %s3, %s4, %s5
  %s7 = sld [smem:[#allocation0]]
  $region61: #{tpu_custom_call.1} parent=0
    _
  %s9 = ssub.s32 1, %s7
  %s10 = scalar_select 0, %s9, %s7
  $region1: #{tpu_custom_call.1} parent=0
    #allocation2 [shape = 'u8[16384]{0}', space=vmem, size = 0x4000, scoped, tag = 'output window, operand 0']
    #allocation3 [shape = 's32[2]{0}', space=sflag, size = 0x8, scoped, tag = 'scoped memory for tpu_custom_call.1']
    %11 = vsyncpa [#allocation3], 0
    %s12 = scalar_lea.sflag [#allocation3], 1
    %13 = vsyncpa %s12, 0
    loop: start=0, step=1, limit=6
    $region2: #{tpu_custom_call.1} parent=1 // loop_pre_header
      _
    $region3: #{tpu_custom_call.1} parent=1 // loop_header
      %s15 = sphi 0, %s19
      %p16 = scmp.ge.s32.totalorder %s15, 6
      %s23 = sphi 0, %s23
      %s25 = sphi 0, %s23
      %s26 = sphi 0, %s25
      %s40 = sphi 0, %s26
      %s44 = sphi 0, %s44
      %s46 = sphi 0, %s44
      %s47 = sphi 0, %s46
      %s61 = sphi 0, %s47
      %s65 = sphi 0, %s65
      %s67 = sphi 0, %s65
      %s68 = sphi 0, %s67
      %s82 = sphi 0, %s68
      %s88 = sphi 0, %s90
      %s91 = sphi 0, %s88
      %s92 = sphi 0, %s91
      %s108 = sphi 0, %s92
      %s114 = sphi 0, %s116
      %s117 = sphi 0, %s114
      %s118 = sphi 0, %s117
      %s134 = sphi 0, %s118
      %s140 = sphi 0, %s142
      %s143 = sphi 0, %s140
      %s144 = sphi 0, %s143
      %s160 = sphi 0, %s144
    $region4: #{tpu_custom_call.1} parent=1 // loop_header_branch
      %18 = sbr.rel (%p16) target = $region8
    $region5: #{tpu_custom_call.1} parent=1 // loop_body
      %s20 = ssub.s32 %s15, 1
      %s21 = ssub.s32 %s15, 2
      %s22 = sadd.s32 %s15, 1
      %s24 = sadd.s32 %s23, 1
      %p27 = scmp.eq.s32.totalorder %s15, 3
      %p28 = scmp.ne.s32.totalorder %s23, %s25
      %p29 = scmp.eq.s32.totalorder %s15, 0
      %p30 = por %p28, %p29
      %p31 = scmp.ne.s32.totalorder %s23, %s25
      %p32 = scmp.eq.s32.totalorder %s20, 3
      %p33 = por %p31, %p32
      %p34 = scmp.ne.s32.totalorder %s25, %s26
      %p35 = scmp.eq.s32.totalorder %s20, 0
      %p36 = por %p34, %p35
      %p37 = scmp.ne.s32.totalorder %s25, %s26
      %p38 = scmp.eq.s32.totalorder %s21, 3
      %p39 = por %p37, %p38
      %p41 = scmp.ne.s32.totalorder %s26, %s40
      %p42 = scmp.eq.s32.totalorder %s21, 0
      %p43 = por %p41, %p42
      %s45 = sadd.s32 %s44, 1
      %p48 = scmp.eq.s32.totalorder %s15, 3
      %p49 = scmp.ne.s32.totalorder %s44, %s46
      %p50 = scmp.eq.s32.totalorder %s15, 0
      %p51 = por %p49, %p50
      %p52 = scmp.ne.s32.totalorder %s44, %s46
      %p53 = scmp.eq.s32.totalorder %s20, 3
      %p54 = por %p52, %p53
      %p55 = scmp.ne.s32.totalorder %s46, %s47
      %p56 = scmp.eq.s32.totalorder %s20, 0
      %p57 = por %p55, %p56
      %p58 = scmp.ne.s32.totalorder %s46, %s47
      %p59 = scmp.eq.s32.totalorder %s21, 3
      %p60 = por %p58, %p59
      %p62 = scmp.ne.s32.totalorder %s47, %s61
      %p63 = scmp.eq.s32.totalorder %s21, 0
      %p64 = por %p62, %p63
      %s66 = sadd.s32 %s65, 1
      %p69 = scmp.eq.s32.totalorder %s15, 3
      %p70 = scmp.ne.s32.totalorder %s65, %s67
      %p71 = scmp.eq.s32.totalorder %s15, 0
      %p72 = por %p70, %p71
      %p73 = scmp.ne.s32.totalorder %s65, %s67
      %p74 = scmp.eq.s32.totalorder %s20, 3
      %p75 = por %p73, %p74
      %p76 = scmp.ne.s32.totalorder %s67, %s68
      %p77 = scmp.eq.s32.totalorder %s20, 0
      %p78 = por %p76, %p77
      %p79 = scmp.ne.s32.totalorder %s67, %s68
      %p80 = scmp.eq.s32.totalorder %s21, 3
      %p81 = por %p79, %p80
      %p83 = scmp.ne.s32.totalorder %s68, %s82
      %p84 = scmp.eq.s32.totalorder %s21, 0
      %p85 = por %p83, %p84
      %s86 = ssub.s32 %s15, %s22
      %p87 = scmp.eq.s32.totalorder %s86, 0
      %s89 = sadd.s32 %s88, 1
      %s90 = scalar_select %p87, %s88, %s89
      %p93 = pneg %p87
      %p94 = scmp.eq.s32.totalorder %s15, 3
      %p95 = por %p93, %p94
      %p96 = scmp.ne.s32.totalorder %s88, %s91
      %p97 = scmp.eq.s32.totalorder %s15, 0
      %p98 = por %p96, %p97
      %p99 = scmp.ne.s32.totalorder %s88, %s91
      %p100 = scmp.eq.s32.totalorder %s20, 3
      %p101 = por %p99, %p100
      %p102 = scmp.ne.s32.totalorder %s91, %s92
      %p103 = scmp.eq.s32.totalorder %s20, 0
      %p104 = por %p102, %p103
      %p105 = scmp.ne.s32.totalorder %s91, %s92
      %p106 = scmp.eq.s32.totalorder %s21, 3
      %p107 = por %p105, %p106
      %p109 = scmp.ne.s32.totalorder %s92, %s108
      %p110 = scmp.eq.s32.totalorder %s21, 0
      %p111 = por %p109, %p110
      %s112 = ssub.s32 %s15, %s22
      %p113 = scmp.eq.s32.totalorder %s112, 0
      %s115 = sadd.s32 %s114, 1
      %s116 = scalar_select %p113, %s114, %s115
      %p119 = pneg %p113
      %p120 = scmp.eq.s32.totalorder %s15, 3
      %p121 = por %p119, %p120
      %p122 = scmp.ne.s32.totalorder %s114, %s117
      %p123 = scmp.eq.s32.totalorder %s15, 0
      %p124 = por %p122, %p123
      %p125 = scmp.ne.s32.totalorder %s114, %s117
      %p126 = scmp.eq.s32.totalorder %s20, 3
      %p127 = por %p125, %p126
      %p128 = scmp.ne.s32.totalorder %s117, %s118
      %p129 = scmp.eq.s32.totalorder %s20, 0
      %p130 = por %p128, %p129
      %p131 = scmp.ne.s32.totalorder %s117, %s118
      %p132 = scmp.eq.s32.totalorder %s21, 3
      %p133 = por %p131, %p132
      %p135 = scmp.ne.s32.totalorder %s118, %s134
      %p136 = scmp.eq.s32.totalorder %s21, 0
      %p137 = por %p135, %p136
      %s138 = ssub.s32 %s15, %s22
      %p139 = scmp.eq.s32.totalorder %s138, 0
      %s141 = sadd.s32 %s140, 1
      %s142 = scalar_select %p139, %s140, %s141
      %p145 = pneg %p139
      %p146 = scmp.eq.s32.totalorder %s15, 3
      %p147 = por %p145, %p146
      %p148 = scmp.ne.s32.totalorder %s140, %s143
      %p149 = scmp.eq.s32.totalorder %s15, 0
      %p150 = por %p148, %p149
      %p151 = scmp.ne.s32.totalorder %s140, %s143
      %p152 = scmp.eq.s32.totalorder %s20, 3
      %p153 = por %p151, %p152
      %p154 = scmp.ne.s32.totalorder %s143, %s144
      %p155 = scmp.eq.s32.totalorder %s20, 0
      %p156 = por %p154, %p155
      %p157 = scmp.ne.s32.totalorder %s143, %s144
      %p158 = scmp.eq.s32.totalorder %s21, 3
      %p159 = por %p157, %p158
      %p161 = scmp.ne.s32.totalorder %s144, %s160
      %p162 = scmp.eq.s32.totalorder %s21, 0
      %p163 = por %p161, %p162
      %p164 = scmp.le.s32.totalorder 1, %s15
      %p165 = scmp.lt.s32.totalorder %s15, 5
      %p166 = pnand %p164, %p165
      %p167 = pneg %p166
      // Predicated region
      $region9: #{tpu_custom_call.1} parent=5 // pred_check
        _
      $region10: #{tpu_custom_call.1} parent=5 // pred_check_branch
        %169 = sbr.rel (%p166) target = $region12
      $region11: #{tpu_custom_call.1} parent=5 // pred_region
        %s170 = ssub.s32 %s15, 1
        // Predicated region
        $region13: #{tpu_custom_call.1} parent=11 // pred_check
          %p171 = pneg %p36
        $region14: #{tpu_custom_call.1} parent=11 // pred_check_branch
          %173 = sbr.rel (%p171) target = $region16
        $region15: #{tpu_custom_call.1} parent=11 // pred_region
          _
        $region16: #{tpu_custom_call.1} parent=11 // pred_fallthru
          _
        // Predicated region
        $region17: #{tpu_custom_call.1} parent=11 // pred_check
          %p174 = pneg %p57
        $region18: #{tpu_custom_call.1} parent=11 // pred_check_branch
          %176 = sbr.rel (%p174) target = $region20
        $region19: #{tpu_custom_call.1} parent=11 // pred_region
          _
        $region20: #{tpu_custom_call.1} parent=11 // pred_fallthru
          _
        // Predicated region
        $region21: #{tpu_custom_call.1} parent=11 // pred_check
          %p177 = pneg %p78
        $region22: #{tpu_custom_call.1} parent=11 // pred_check_branch
          %179 = sbr.rel (%p177) target = $region24
        $region23: #{tpu_custom_call.1} parent=11 // pred_region
          _
        $region24: #{tpu_custom_call.1} parent=11 // pred_fallthru
          _
      $region12: #{tpu_custom_call.1} parent=5 // pred_fallthru
        _
      %p180 = scmp.lt.s32.totalorder %s15, 4
      // Predicated region
      $region25: #{tpu_custom_call.1} parent=5 // pred_check
        %p181 = pneg %p180
      $region26: #{tpu_custom_call.1} parent=5 // pred_check_branch
        %183 = sbr.rel (%p181) target = $region28
      $region27: #{tpu_custom_call.1} parent=5 // pred_region
        _
      $region28: #{tpu_custom_call.1} parent=5 // pred_fallthru
        _
      %p184 = scmp.le.s32.totalorder 1, %s15
      %p185 = scmp.lt.s32.totalorder %s15, 5
      %p186 = pnand %p184, %p185
      %p187 = pneg %p186
      // Predicated region
      $region29: #{tpu_custom_call.1} parent=5 // pred_check
        _
      $region30: #{tpu_custom_call.1} parent=5 // pred_check_branch
        %189 = sbr.rel (%p186) target = $region32
      $region31: #{tpu_custom_call.1} parent=5 // pred_region
        %s190 = ssub.s32 %s15, 1
        %p191 = pneg %p36
        %p192 = pneg %p33
        %p193 = pneg %p57
        %p194 = pneg %p54
        %p195 = pneg %p78
        %p196 = pneg %p75
        %p197 = pneg %p104
        %p198 = pneg %p101
        %s199 = sand.u32 %s91, 1
        %s200 = scalar_lea.sflag [#allocation3], %s199
        %s201 = sand.u32 %s91, 1
        %s202 = smul.addr %s201, 16
        %s203 = scalar_lea.vmem [#allocation2], %s202
        %p204 = pneg %p130
        %p205 = pneg %p127
        %p206 = scmp.lt.s32.totalorder %s20, 3
        %s207 = scalar_select %p206, %s20, 3
        %s208 = smul.addr %s207, 2
        %s209 = smul.addr %s208, 8
        %s210 = scalar_lea.vmem %s4, %s209
        %p211 = pneg %p156
        %p212 = pneg %p153
        %p213 = scmp.lt.s32.totalorder %s20, 3
        %s214 = scalar_select %p213, %s20, 3
        %s215 = smul.addr %s214, 2
        %s216 = smul.addr %s215, 8
        %s217 = scalar_lea.vmem %s5, %s216
        %p218 = scmp.lt.s32.totalorder %s20, 3
        %s219 = scalar_select %p218, %s20, 3
        %s220 = smul.addr %s219, 2
        %s221 = smul.addr %s220, 8
        %s222 = scalar_lea.vmem %s4, %s221
        %p223 = scmp.lt.s32.totalorder %s20, 3
        %s224 = scalar_select %p223, %s20, 3
        %s225 = smul.addr %s224, 2
        %s226 = smul.addr %s225, 8
        %s227 = scalar_lea.vmem %s5, %s226
        %v228 = vld [vmem:[%s0] sm:$0xff]
        %v229 = vld [vmem:[%s0 + $0x8] sm:$0xff]
        %v230 = vld [vmem:[%s1] sm:$0xff]
        %v231 = vld [vmem:[%s1 + $0x8] sm:$0xff]
        %v232 = vld [vmem:[%s1 + $0x10] sm:$0xff]
        %v233 = vld [vmem:[%s1 + $0x18] sm:$0xff]
        %vm234 = vcmask 261120
        %v236 = vsel %vm234, %v228, 0
        %v239 = vsel %vm234, %v229, 0
        %241 = vmatprep.subr.mxu0 0.0
        %242 = vmatpush1.msra.mxu0 %v230
        %243 = vmatprep.subr.mxu0 0.0
        %244 = vmatpush1.msra.mxu0 %v231
        %245 = vmatprep.subr.mxu0 0.0
        %246 = vmatpush1.msra.mxu0 %v232
        %247 = vmatprep.subr.mxu0 0.0
        %248 = vmatpush1.msra.mxu0 %v233
        %249 = vmatprep.subr.mxu0 0.0
        %250 = vmatpush1.msra.mxu0 0.0
        %251 = vmatprep.subr.mxu0 0.0
        %252 = vmatpush1.msra.mxu0 0.0
        %253 = vmatprep.subr.mxu0 0.0
        %254 = vmatpush1.msra.mxu0 0.0
        %255 = vmatprep.subr.mxu0 0.0
        %256 = vmatpush1.msra.mxu0 0.0
        %257 = vmatprep.subr.mxu0 0.0
        %258 = vmatpush1.msra.mxu0 0.0
        %259 = vmatprep.subr.mxu0 0.0
        %260 = vmatpush1.msra.mxu0 0.0
        %261 = vmatprep.subr.mxu0 0.0
        %262 = vmatpush1.msra.mxu0 0.0
        %263 = vmatprep.subr.mxu0 0.0
        %264 = vmatpush1.msra.mxu0 0.0
        %265 = vmatprep.subr.mxu0 0.0
        %266 = vmatpush1.msra.mxu0 0.0
        %267 = vmatprep.subr.mxu0 0.0
        %268 = vmatpush1.msra.mxu0 0.0
        %269 = vmatprep.subr.mxu0 0.0
        %270 = vmatpush1.msra.mxu0 0.0
        %271 = vmatprep.subr.mxu0 0.0
        %272 = vmatpush1.msra.mxu0 0.0
        %273 = vmatprep.subr.mxu0 0.0
        %274 = vmatpush1.msra.mxu0 0.0
        %275 = vmatprep.subr.mxu0 0.0
        %276 = vmatpush1.msra.mxu0 0.0
        %277 = vmatprep.subr.mxu0 0.0
        %278 = vmatpush1.msra.mxu0 0.0
        %279 = vmatprep.subr.mxu0 0.0
        %280 = vmatpush1.msra.mxu0 0.0
        %281 = vmatprep.subr.mxu0 0.0
        %282 = vmatpush1.msra.mxu0 0.0
        %283 = vmatprep.subr.mxu0 0.0
        %284 = vmatpush1.msra.mxu0 0.0
        %285 = vmatprep.subr.mxu0 0.0
        %286 = vmatpush1.msra.mxu0 0.0
        %287 = vmatprep.subr.mxu0 0.0
        %288 = vmatpush1.msra.mxu0 0.0
        %289 = vmatprep.subr.mxu0 0.0
        %290 = vmatpush1.msra.mxu0 0.0
        %291 = vmatprep.subr.mxu0 0.0
        %292 = vmatpush1.msra.mxu0 0.0
        %293 = vmatprep.subr.mxu0 0.0
        %294 = vmatpush1.msra.mxu0 0.0
        %295 = vmatprep.subr.mxu0 0.0
        %296 = vmatpush1.msra.mxu0 0.0
        %297 = vmatprep.subr.mxu0 0.0
        %298 = vmatpush1.msra.mxu0 0.0
        %299 = vmatprep.subr.mxu0 0.0
        %300 = vmatpush1.msra.mxu0 0.0
        %301 = vmatprep.subr.mxu0 0.0
        %302 = vmatpush1.msra.mxu0 0.0
        %303 = vmatprep.subr.mxu0 0.0
        %304 = vmatpush1.msra.mxu0 0.0
        %305 = vmatprep.mubr.f32.mxu0 0.0
        %306 = vmatmul.mubr.f32.gmra.mrb[0].mxu0 %v236
        %v307 = vpop.f32.mrb[0].mxu0
        %v308 = vadd.f32 0.0, %v307
        %v309 = vpop.f32.mrb[0].mxu0
        %310 = vmatprep.mubr.f32.mxu0 0.0
        %311 = vmatmul.mubr.f32.gmra.mrb[0].mxu0 %v239
        %v312 = vpop.f32.mrb[0].mxu0
        %v313 = vadd.f32 0.0, %v312
        %v314 = vpop.f32.mrb[0].mxu0
        %315 = vdwg.mxu0
        %vm316 = vcmask 31744
        %v317 = vsel %vm316, %v308, -inf
        %v318 = vsel %vm316, %v313, -inf
        %v319 = vmax.f32 %v317, %v318
        %v320 = vrot.slane %v319, 4
        %v321 = vmax.f32 %v319, %v320
        %v322 = vrot.slane %v321, 2
        %v323 = vmax.f32 %v321, %v322
        %v324 = vrot.slane %v323, 1
        %v325 = vmax.f32 %v323, %v324
        %v326 = vsub.f32 %v308, %v325
        %v327 = vsub.f32 %v313, %v325
        %v328 = vmul.f32 %v326, 1.442695
        %v329 = vpow.pop %v328
        %v330 = vmul.f32 %v327, 1.442695
        %v331 = vpow.pop %v330
        %v332 = vsel %vm316, %v329, 0.0
        %v333 = vsel %vm316, %v331, 0.0
        %v334 = vadd.f32 %v332, %v333
        %v335 = vrot.slane %v334, 4
        %v336 = vadd.f32 %v334, %v335
        %v337 = vrot.slane %v336, 2
        %v338 = vadd.f32 %v336, %v337
        %v339 = vrot.slane %v338, 1
        %v340 = vadd.f32 %v338, %v339
        %v341 = vrcp.pop %v340
        %v342 = vmul.f32 %v329, %v341
        %v343 = vmul.f32 %v331, %v341
        %v344 = vsel %vm316, %v342, 0.0
        %345 = vadd.xlane.f32.xlu0 %v344
        %v346 = vpop.xlane.xlu0 %345
        %v347 = vsel %vm316, %v343, 0.0
        %348 = vadd.xlane.f32.xlu0 %v347
        %v349 = vpop.xlane.xlu0 %348
        %v350 = vadd.f32 %v346, %v349
        %v351 = vrot.slane %v350, 4
        %v352 = vadd.f32 %v350, %v351
        %v353 = vrot.slane %v352, 2
        %v354 = vadd.f32 %v352, %v353
        %v355 = vrot.slane %v354, 1
        %v356 = vadd.f32 %v354, %v355
        %v357 = vsub.f32 %v356, %v346
        %v358 = vsub.f32 %v356, %v349
        %v359 = vmul.f32 %v342, %v357
        %v360 = vmul.f32 %v343, %v358
        %v361 = vsel %vm316, %v359, -inf
        %362 = vmax.xlane.f32.xlu0 %v361
        %v363 = vpop.xlane.xlu0 %362
        %v364 = vsel %vm316, %v360, -inf
        %365 = vmax.xlane.f32.xlu0 %v364
        %v366 = vpop.xlane.xlu0 %365
        %vm367 = vcmp.eq.f32.partialorder %v359, %v363
        %vm368 = vcmp.eq.f32.partialorder %v360, %v366
        %vm369 = vcmp.ge.f32.partialorder %v359, 1.0
        %vm370 = vcmp.ge.f32.partialorder %v360, 1.0
        %vm371 = vmor %vm367, %vm369
        %vm372 = vmor %vm368, %vm370
        %v373 = vlaneseq
        %v374 = vand.u32 %v373, 127
        %v375 = vstv %s20
        %vm376 = vcmp.eq.s32.totalorder %v374, %v375
        %vm377 = vmand %vm371, %vm376
        %vm378 = vmand %vm372, %vm376
        %v379 = vsel %vm377, 1.0, 0.0
        %v380 = vsel %vm378, 1.0, 0.0
        %v381 = vsel %vm316, %v379, 0.0
        %382 = vadd.xlane.f32.xlu0 %v381
        %v383 = vpop.xlane.xlu0 %382
        %v384 = vsel %vm316, %v380, 0.0
        %385 = vadd.xlane.f32.xlu0 %v384
        %v386 = vpop.xlane.xlu0 %385
        %v387 = vsel %vm376, %v359, 0.0
        %v388 = vsel %vm376, %v360, 0.0
        %v389 = vsel %vm316, %v387, 0.0
        %390 = vadd.xlane.f32.xlu0 %v389
        %v391 = vpop.xlane.xlu0 %390
        %v392 = vsel %vm316, %v388, 0.0
        %393 = vadd.xlane.f32.xlu0 %v392
        %v394 = vpop.xlane.xlu0 %393
        %v395 = vld [vmem:[%s2] sm:$0xff]
        %v396 = vld [vmem:[%s2 + $0x8] sm:$0xff]
        %v397 = vmul.f32 %v395, %v383
        %v398 = vmul.f32 %v396, %v386
        %399 = vst [vmem:[%s203] sm:$0xff] %v397
        %400 = vst [vmem:[%s203 + $0x8] sm:$0xff] %v398
        %v401 = vcvt.f32.s32.to.zero.pseudo %v383
        %v402 = vcvt.f32.s32.to.zero.pseudo %v386
        %vm403 = vcmask 7168
        %404 = vst.msk [vmem:[%s222] sm:$0xff] %vm403, %v401
        %405 = vst.msk [vmem:[%s222 + $0x8] sm:$0xff] %vm403, %v402
        %406 = vst.msk [vmem:[%s227] sm:$0xff] %vm403, %v391
        %407 = vst.msk [vmem:[%s227 + $0x8] sm:$0xff] %vm403, %v394
        %s408 = sand.u32 %s91, 1
        %s409 = scalar_lea.sflag [#allocation3], %s408
        %s410 = sand.u32 %s91, 1
        %s411 = smul.addr %s410, 16
        %s412 = scalar_lea.vmem [#allocation2], %s411
        %p413 = scmp.lt.s32.totalorder %s20, 3
        %s414 = scalar_select %p413, %s20, 3
        %s415 = smul.addr %s414, 2
        %s416 = smul.addr %s415, 8
        %s417 = scalar_lea.vmem %s4, %s416
        %p418 = scmp.lt.s32.totalorder %s20, 3
        %s419 = scalar_select %p418, %s20, 3
        %s420 = smul.addr %s419, 2
        %s421 = smul.addr %s420, 8
        %s422 = scalar_lea.vmem %s5, %s421
        // Predicated region
        $region33: #{tpu_custom_call.1} parent=31 // pred_check
          %p423 = pneg %p101
        $region34: #{tpu_custom_call.1} parent=31 // pred_check_branch
          %425 = sbr.rel (%p423) target = $region36
        $region35: #{tpu_custom_call.1} parent=31 // pred_region
          %s427 = ssub.s32 256, 256
          %428 = vsyncadd %s409, %s427
          %s429 = smul.addr %s20, 2
          %s430 = smul.addr %s429, 128
          %s431 = scalar_lea.hbm %s3, %s430
          %s432 = sshll.u32 %s412, 4
          %s433 = int_to_ptr.vmem [resolvable:$true] %s432
          %438 = dma.vmem_to_hbm [thread:$0]  %s433, 256, %s431, %s409, 128, 128, 8
        $region36: #{tpu_custom_call.1} parent=31 // pred_fallthru
          _
        // Predicated region
        $region37: #{tpu_custom_call.1} parent=31 // pred_check
          %p439 = pneg %p127
        $region38: #{tpu_custom_call.1} parent=31 // pred_check_branch
          %441 = sbr.rel (%p439) target = $region40
        $region39: #{tpu_custom_call.1} parent=31 // pred_region
          _
        $region40: #{tpu_custom_call.1} parent=31 // pred_fallthru
          _
        // Predicated region
        $region41: #{tpu_custom_call.1} parent=31 // pred_check
          %p442 = pneg %p153
        $region42: #{tpu_custom_call.1} parent=31 // pred_check_branch
          %444 = sbr.rel (%p442) target = $region44
        $region43: #{tpu_custom_call.1} parent=31 // pred_region
          _
        $region44: #{tpu_custom_call.1} parent=31 // pred_fallthru
          _
      $region32: #{tpu_custom_call.1} parent=5 // pred_fallthru
        _
      %p445 = scmp.le.s32.totalorder 2, %s15
      // Predicated region
      $region45: #{tpu_custom_call.1} parent=5 // pred_check
        %p446 = pneg %p445
      $region46: #{tpu_custom_call.1} parent=5 // pred_check_branch
        %448 = sbr.rel (%p446) target = $region48
      $region47: #{tpu_custom_call.1} parent=5 // pred_region
        %s449 = ssub.s32 %s15, 2
        // Predicated region
        $region49: #{tpu_custom_call.1} parent=47 // pred_check
          %p450 = pneg %p107
        $region50: #{tpu_custom_call.1} parent=47 // pred_check_branch
          %452 = sbr.rel (%p450) target = $region52
        $region51: #{tpu_custom_call.1} parent=47 // pred_region
          %s453 = sand.u32 %s92, 1
          %s454 = scalar_lea.sflag [#allocation3], %s453
          %s455 = sand.u32 %s92, 1
          %s456 = smul.addr %s455, 16
          %s457 = scalar_lea.vmem [#allocation2], %s456
          %458 = dma.done %s454, 256
        $region52: #{tpu_custom_call.1} parent=47 // pred_fallthru
          _
        // Predicated region
        $region53: #{tpu_custom_call.1} parent=47 // pred_check
          %p459 = pneg %p133
        $region54: #{tpu_custom_call.1} parent=47 // pred_check_branch
          %461 = sbr.rel (%p459) target = $region56
        $region55: #{tpu_custom_call.1} parent=47 // pred_region
          %p462 = scmp.lt.s32.totalorder %s21, 3
          %s463 = scalar_select %p462, %s21, 3
          %s464 = smul.addr %s463, 2
          %s465 = smul.addr %s464, 8
          %s466 = scalar_lea.vmem %s4, %s465
        $region56: #{tpu_custom_call.1} parent=47 // pred_fallthru
          _
        // Predicated region
        $region57: #{tpu_custom_call.1} parent=47 // pred_check
          %p467 = pneg %p159
        $region58: #{tpu_custom_call.1} parent=47 // pred_check_branch
          %469 = sbr.rel (%p467) target = $region60
        $region59: #{tpu_custom_call.1} parent=47 // pred_region
          %p470 = scmp.lt.s32.totalorder %s21, 3
          %s471 = scalar_select %p470, %s21, 3
          %s472 = smul.addr %s471, 2
          %s473 = smul.addr %s472, 8
          %s474 = scalar_lea.vmem %s5, %s473
        $region60: #{tpu_custom_call.1} parent=47 // pred_fallthru
          _
      $region48: #{tpu_custom_call.1} parent=5 // pred_fallthru
        _
    $region6: #{tpu_custom_call.1} parent=1 // loop_footer
      %s19 = sadd.s32 1, %s15
    $region7: #{tpu_custom_call.1} parent=1 // loop_footer_branch
      %14 = sbr.rel target = $region3
    $region8: #{tpu_custom_call.1} parent=1 // loop_exit
      _
    %475 = vsyncpa [#allocation3], 1
    %s476 = scalar_lea.sflag [#allocation3], 1
    %477 = vsyncpa %s476, 1

</llo_original>
